<compile_context>
chip_gen: v7x
topology: tpu7x:2x2x1
jax: 0.10.0
libtpu: 0.0.40
codegen_flags: <defaults>
</compile_context>

<pallas_src>
import functools

import jax
import jax.numpy as jnp
from jax.experimental import pallas as pl
from jax.experimental.pallas import tpu as pltpu


def _round_up(a: int, b: int) -> int:
    return (a + b - 1) // b * b


def _device_params():
    """MXU-friendly padding multiple and physical VMEM capacity for this chip."""
    kind = jax.devices()[0].device_kind.lower()
    old_gen = any(tag in kind for tag in ("v2", "v3", "v4", "v5"))
    mxu_mult = 128 if old_gen else 256          # v6e / v7x MXUs are 256x256
    try:
        vmem_cap = int(pltpu.get_tpu_info().vmem_capacity_bytes)
    except Exception:
        vmem_cap = 64 << 20                     # conservative (v7x per-core)
    return mxu_mult, vmem_cap


def _pick_tm(M: int, tm_max: int):
    """Row tile: multiple of 16 (bf16 sublanes), minimal padding waste, and
    >= 2 grid steps when M allows so both v7x TensorCores get work."""
    m16 = _round_up(max(M, 16), 16)
    tiles = (256, 192, 128) if m16 >= 256 else (128, 96, 64, 48, 32, 16)
    cands = []
    for t in tiles:
        if t > tm_max:
            continue
        m_p = _round_up(m16, t)
        if m_p // t >= 2:
            cands.append((m_p - M, -t, t, m_p))
    if not cands:                               # tiny inputs: single step
        t = min(_round_up(tm_max, 16), m16)
        return t, _round_up(m16, t)
    cands.sort()
    _, _, t, m_p = cands[0]
    return t, m_p


def _vmem_need(tm, in_p, hid_p, th, out_bytes, resident):
    """Estimated VMEM footprint for a given hidden-tile size."""
    bf = 2                                          # bf16 bytes
    need = 2 * tm * in_p * bf                       # x tile (double-buffered)
    need += 2 * tm * in_p * out_bytes               # out tile (double-buffered)
    need += tm * in_p * 4                           # f32 accumulator scratch
    need += tm * th * 6                             # f32 hidden + bf16 cast
    if resident:
        need += 2 * in_p * hid_p * bf               # W1 + W2, single-buffered
        need += (hid_p + in_p) * 4                  # b1 + b2 (f32)
    else:
        need += 2 * 2 * in_p * th * bf              # W1/W2 tiles, double-buffered
        need += 2 * th * 4 + in_p * 4               # b1 tile + resident b2
    return need + (2 << 20)                         # slop for Mosaic internals


def mlp_kernel(x_ref, w1_ref, b1_ref, w2_ref, b2_ref, o_ref, acc_ref):
    j = pl.program_id(1)

    @pl.when(j == 0)
    def _init():
        acc_ref[...] = jnp.zeros_like(acc_ref)

    # First linear for this hidden tile: bf16 MXU, f32 accumulate, fused
    # bias + ReLU epilogue in f32.
    h = jnp.dot(x_ref[...], w1_ref[...], preferred_element_type=jnp.float32)
    h = jnp.maximum(h + b1_ref[...], 0.0)
    # TODO(synk): training-mode dropout (p > 0) would mask h here using
    # pltpu.prng_seed + pltpu.prng_random_bits.

    # Second linear: accumulate this hidden tile's contribution in f32.
    acc_ref[...] += jnp.dot(h.astype(w2_ref.dtype), w2_ref[...],
                            preferred_element_type=jnp.float32)

    @pl.when(j == pl.num_programs(1) - 1)
    def _finalize():
        o_ref[...] = (acc_ref[...] + b2_ref[...]).astype(o_ref.dtype)


def _pad2d(a, rows, cols, dtype):
    r, c = a.shape
    if (r, c) == (rows, cols) and a.dtype == dtype:
        return a                     # static check: skip the copy entirely
    out = jnp.zeros((rows, cols), dtype)
    return out.at[:r, :c].set(a.astype(dtype))


@functools.partial(jax.jit, static_argnames=("tm", "out_dtype", "hidden_tile"))
def transformer_mlp(x, w1, b1, w2, b2, *, tm=256, out_dtype=jnp.bfloat16,
                    hidden_tile=None):
    """Fused MLP: relu(x @ w1 + b1) @ w2 + b2 (dropout p=0 -> identity).

    x: (M, in_features); w1: (in, hidden); b1: (1, hidden);
    w2: (hidden, in); b2: (1, in).  Weights are pre-transposed so the kernel
    computes x @ W + b (same math as nn.Linear's x @ W.T + b)."""
    M, in_f = x.shape
    hid = w1.shape[1]
    compute_dtype = jnp.bfloat16
    out_b = jnp.dtype(out_dtype).itemsize

    mxu_mult, vmem_cap = _device_params()
    in_p = _round_up(in_f, mxu_mult)
    hid_p = _round_up(hid, mxu_mult)
    tm_eff, m_p = _pick_tm(M, tm)

    budget = vmem_cap - (12 << 20)       # headroom for Mosaic internals

    # Hidden tile: full hid_p (resident weights) when it fits single-buffered,
    # else the largest divisor tile that fits (v7x's 64 MiB VMEM hits first).
    if hidden_tile is not None:
        th = min(_round_up(int(hidden_tile), mxu_mult), hid_p)
        if hid_p % th:
            th = mxu_mult
    elif _vmem_need(tm_eff, in_p, hid_p, hid_p, out_b, True) <= budget:
        th = hid_p
    else:
        th = mxu_mult
        for cand in (4096, 2048, 1024, 512, 256, 128):
            if (cand < hid_p and cand % mxu_mult == 0 and hid_p % cand == 0
                    and _vmem_need(tm_eff, in_p, hid_p, cand, out_b, False)
                    <= budget):
                th = cand
                break
    n_hid = hid_p // th
    resident = n_hid == 1

    # TODO(synk): for repeated calls, pre-pad / pre-cast the weights once
    # outside this function to avoid re-reading them from HBM every call.
    xp = _pad2d(x, m_p, in_p, compute_dtype)
    w1p = _pad2d(w1, in_p, hid_p, compute_dtype)
    b1p = _pad2d(b1, 1, hid_p, jnp.float32)
    w2p = _pad2d(w2, hid_p, in_p, compute_dtype)
    b2p = _pad2d(b2, 1, in_p, jnp.float32)

    vmem_need = _vmem_need(tm_eff, in_p, hid_p, th, out_b, resident)
    vmem_limit = int(max(min(vmem_need + (4 << 20), vmem_cap - (8 << 20)),
                         32 << 20))

    if resident:
        # Constant blocks: single whole-array copy in VMEM (no double buffer).
        w1_spec = pl.BlockSpec(memory_space=pltpu.MemorySpace.VMEM)
        b1_spec = pl.BlockSpec(memory_space=pltpu.MemorySpace.VMEM)
        w2_spec = pl.BlockSpec(memory_space=pltpu.MemorySpace.VMEM)
    else:
        w1_spec = pl.BlockSpec((in_p, th), lambda i, j: (0, j))
        b1_spec = pl.BlockSpec((1, th), lambda i, j: (0, j))
        w2_spec = pl.BlockSpec((th, in_p), lambda i, j: (j, 0))
    b2_spec = pl.BlockSpec(memory_space=pltpu.MemorySpace.VMEM)  # always constant

    cost = pl.CostEstimate(
        flops=4 * m_p * in_p * hid_p,                   # two matmuls
        transcendentals=0,
        bytes_accessed=(m_p * in_p * 2                  # x (bf16)
                        + 2 * in_p * hid_p * 2          # W1 + W2 (bf16)
                        + (hid_p + in_p) * 4            # biases (f32)
                        + m_p * in_p * out_b),          # output
    )

    out_p = pl.pallas_call(
        mlp_kernel,
        out_shape=jax.ShapeDtypeStruct((m_p, in_p), out_dtype),
        grid_spec=pltpu.PrefetchScalarGridSpec(
            num_scalar_prefetch=0,
            grid=(m_p // tm_eff, n_hid),
            in_specs=[
                pl.BlockSpec((tm_eff, in_p), lambda i, j: (i, 0)),   # x tile
                w1_spec, b1_spec, w2_spec, b2_spec,
            ],
            out_specs=pl.BlockSpec((tm_eff, in_p), lambda i, j: (i, 0)),
            scratch_shapes=[pltpu.VMEM((tm_eff, in_p), jnp.float32)],
        ),
        compiler_params=pltpu.CompilerParams(
            dimension_semantics=("parallel", "arbitrary"),
            vmem_limit_bytes=vmem_limit,
        ),
        cost_estimate=cost,
    )(xp, w1p, b1p, w2p, b2p)

    # Strip row / lane padding.
    return out_p[:M, :in_f]


def _reference(x2d, w1, b1, w2, b2):
    """Pure-JAX reference with the same bf16 input/weight casts (f32 accum)."""
    xb = x2d.astype(jnp.bfloat16)
    h = jnp.maximum(jnp.dot(xb, w1.astype(jnp.bfloat16),
                            preferred_element_type=jnp.float32) + b1, 0.0)
    return jnp.dot(h.astype(jnp.bfloat16), w2.astype(jnp.bfloat16),
                   preferred_element_type=jnp.float32) + b2


def _make_params(key, in_features, hidden_features):
    kw1, kb1, kw2, kb2 = jax.random.split(key, 4)
    lim1 = 1.0 / jnp.sqrt(jnp.float32(in_features))
    w1 = jax.random.uniform(kw1, (in_features, hidden_features),
                            minval=-lim1, maxval=lim1, dtype=jnp.float32)
    b1 = jax.random.uniform(kb1, (1, hidden_features),
                            minval=-lim1, maxval=lim1, dtype=jnp.float32)
    lim2 = 1.0 / jnp.sqrt(jnp.float32(hidden_features))
    w2 = jax.random.uniform(kw2, (hidden_features, in_features),
                            minval=-lim2, maxval=lim2, dtype=jnp.float32)
    b2 = jax.random.uniform(kb2, (1, in_features),
                            minval=-lim2, maxval=lim2, dtype=jnp.float32)
    return w1, b1, w2, b2


if __name__ == "__main__":
    # Small shapes consistent with the module: batch=2, seq=8, in=32, hidden=64.
    batch, seq, in_features, hidden_features = 2, 8, 32, 64
    key = jax.random.PRNGKey(0)
    kx, kp, kp2 = jax.random.split(key, 3)

    x = jax.random.normal(kx, (batch, seq, in_features), dtype=jnp.float32)
    x2d = x.reshape(batch * seq, in_features)

    # --- Case 1: resident-weight path (weights fit VMEM single-buffered). ----
    w1, b1, w2, b2 = _make_params(kp, in_features, hidden_features)
    out2d = transformer_mlp(x2d, w1, b1, w2, b2)
    out = out2d.reshape(batch, seq, in_features)
    jax.block_until_ready(out)
    ref = _reference(x2d, w1, b1, w2, b2)
    assert jnp.allclose(out2d.astype(jnp.float32), ref, atol=5e-2, rtol=5e-2), \
        "resident-path mismatch vs reference"

    # --- Case 2: hidden-axis-tiled path (forced) — validates the accumulator
    #     pattern that large widths take on v7x (64 MiB VMEM). ----------------
    hidden_big = 512
    w1t, b1t, w2t, b2t = _make_params(kp2, in_features, hidden_big)
    out2d_t = transformer_mlp(x2d, w1t, b1t, w2t, b2t, hidden_tile=256)
    jax.block_until_ready(out2d_t)
    ref_t = _reference(x2d, w1t, b1t, w2t, b2t)
    assert jnp.allclose(out2d_t.astype(jnp.float32), ref_t, atol=5e-2, rtol=5e-2), \
        "tiled-path mismatch vs reference"

    print("KERNEL_OK")
</pallas_src>

<mosaic_0001>
module attributes {stable_mosaic.version = 11 : i64} {
  func.func @mlp_kernel(%arg0: i32, %arg1: i32, %arg2: memref<16x256xbf16, #tpu.memory_space<vmem>>, %arg3: memref<256x256xbf16, #tpu.memory_space<vmem>>, %arg4: memref<1x256xf32, #tpu.memory_space<vmem>>, %arg5: memref<256x256xbf16, #tpu.memory_space<vmem>>, %arg6: memref<1x256xf32, #tpu.memory_space<vmem>>, %arg7: memref<16x256xbf16, #tpu.memory_space<vmem>>, %arg8: memref<16x256xf32, #tpu.memory_space<vmem>>) attributes {dimension_semantics = [#tpu.dimension_semantics<parallel>, #tpu.dimension_semantics<arbitrary>], iteration_bounds = array<i64: 1, 1>, scalar_prefetch = 0 : i64, scratch_operands = 1 : i64, tpu.core_type = #tpu.core_type<tc>, window_params = [{transform_indices = @transform_0, window_bounds = array<i64: 16, 256>}, {pipeline_mode = #tpu.pipeline_mode<synchronous>, transform_indices = @transform_1, window_bounds = array<i64: 256, 256>}, {pipeline_mode = #tpu.pipeline_mode<synchronous>, transform_indices = @transform_2, window_bounds = array<i64: 1, 256>}, {pipeline_mode = #tpu.pipeline_mode<synchronous>, transform_indices = @transform_3, window_bounds = array<i64: 256, 256>}, {pipeline_mode = #tpu.pipeline_mode<synchronous>, transform_indices = @transform_4, window_bounds = array<i64: 1, 256>}, {transform_indices = @transform_5, window_bounds = array<i64: 16, 256>}]} {
    %c0_i32 = arith.constant 0 : i32
    %0 = arith.cmpi eq, %arg1, %c0_i32 : i32
    %1 = arith.extui %0 : i1 to i32
    %c0_i32_0 = arith.constant 0 : i32
    %2 = arith.cmpi ne, %1, %c0_i32_0 : i32
    scf.if %2 {
      %cst_16 = arith.constant 0.000000e+00 : f32
      %20 = vector.broadcast %cst_16 : f32 to vector<16x256xf32>
      %c0_17 = arith.constant 0 : index
      %c0_18 = arith.constant 0 : index
      %21 = vector.load %arg8[%c0_17, %c0_18] : memref<16x256xf32, #tpu.memory_space<vmem>>, vector<16x256xf32>
      tpu.vector_store %arg8[%c0_17, %c0_18], %20 {strides = array<i32>} : memref<16x256xf32, #tpu.memory_space<vmem>>, vector<16x256xf32>,
    } else {
    }
    %c0 = arith.constant 0 : index
    %c0_1 = arith.constant 0 : index
    %3 = vector.load %arg2[%c0, %c0_1] : memref<16x256xbf16, #tpu.memory_space<vmem>>, vector<16x256xbf16>
    %c0_2 = arith.constant 0 : index
    %c0_3 = arith.constant 0 : index
    %4 = vector.load %arg3[%c0_2, %c0_3] : memref<256x256xbf16, #tpu.memory_space<vmem>>, vector<256x256xbf16>
    %cst = arith.constant dense<0.000000e+00> : vector<16x256xf32>
    %5 = tpu.matmul %3, %4, %cst {dimension_numbers = #tpu.dot_dimension_numbers<[1], [0], [0], [1], [0, 0, 1, 1], [], []>} : vector<16x256xbf16>, vector<256x256xbf16>, vector<16x256xf32> -> vector<16x256xf32>
    %c0_4 = arith.constant 0 : index
    %c0_5 = arith.constant 0 : index
    %6 = vector.load %arg4[%c0_4, %c0_5] : memref<1x256xf32, #tpu.memory_space<vmem>>, vector<1x256xf32>
    %7 = vector.broadcast %6 : vector<1x256xf32> to vector<16x256xf32>
    %8 = arith.addf %5, %7 : vector<16x256xf32>
    %cst_6 = arith.constant 0.000000e+00 : f32
    %9 = vector.broadcast %cst_6 : f32 to vector<16x256xf32>
    %10 = arith.maximumf %8, %9 : vector<16x256xf32>
    %c0_7 = arith.constant 0 : index
    %c0_8 = arith.constant 0 : index
    %11 = vector.load %arg8[%c0_7, %c0_8] : memref<16x256xf32, #tpu.memory_space<vmem>>, vector<16x256xf32>
    %12 = arith.truncf %10 : vector<16x256xf32> to vector<16x256xbf16>
    %c0_9 = arith.constant 0 : index
    %c0_10 = arith.constant 0 : index
    %13 = vector.load %arg5[%c0_9, %c0_10] : memref<256x256xbf16, #tpu.memory_space<vmem>>, vector<256x256xbf16>
    %cst_11 = arith.constant dense<0.000000e+00> : vector<16x256xf32>
    %14 = tpu.matmul %12, %13, %cst_11 {dimension_numbers = #tpu.dot_dimension_numbers<[1], [0], [0], [1], [0, 0, 1, 1], [], []>} : vector<16x256xbf16>, vector<256x256xbf16>, vector<16x256xf32> -> vector<16x256xf32>
    %15 = arith.addf %11, %14 : vector<16x256xf32>
    %c0_12 = arith.constant 0 : index
    %c0_13 = arith.constant 0 : index
    %16 = vector.load %arg8[%c0_12, %c0_13] : memref<16x256xf32, #tpu.memory_space<vmem>>, vector<16x256xf32>
    tpu.vector_store %arg8[%c0_12, %c0_13], %15 {strides = array<i32>} : memref<16x256xf32, #tpu.memory_space<vmem>>, vector<16x256xf32>,
    %c0_i32_14 = arith.constant 0 : i32
    %17 = arith.cmpi eq, %arg1, %c0_i32_14 : i32
    %18 = arith.extui %17 : i1 to i32
    %c0_i32_15 = arith.constant 0 : i32
    %19 = arith.cmpi ne, %18, %c0_i32_15 : i32
    scf.if %19 {
      %c0_16 = arith.constant 0 : index
      %c0_17 = arith.constant 0 : index
      %20 = vector.load %arg8[%c0_16, %c0_17] : memref<16x256xf32, #tpu.memory_space<vmem>>, vector<16x256xf32>
      %c0_18 = arith.constant 0 : index
      %c0_19 = arith.constant 0 : index
      %21 = vector.load %arg6[%c0_18, %c0_19] : memref<1x256xf32, #tpu.memory_space<vmem>>, vector<1x256xf32>
      %22 = vector.broadcast %21 : vector<1x256xf32> to vector<16x256xf32>
      %23 = arith.addf %20, %22 : vector<16x256xf32>
      %24 = arith.truncf %23 : vector<16x256xf32> to vector<16x256xbf16>
      %c0_20 = arith.constant 0 : index
      %c0_21 = arith.constant 0 : index
      %25 = vector.load %arg7[%c0_20, %c0_21] : memref<16x256xbf16, #tpu.memory_space<vmem>>, vector<16x256xbf16>
      tpu.vector_store %arg7[%c0_20, %c0_21], %24 {strides = array<i32>} : memref<16x256xbf16, #tpu.memory_space<vmem>>, vector<16x256xbf16>,
    } else {
    }
    return
  }
  func.func @transform_0(%arg0: i32, %arg1: i32) -> (i32, i32) {
    %c0_i32 = arith.constant 0 : i32
    %c0_i32_0 = arith.constant 0 : i32
    return %arg0, %c0_i32 : i32, i32
  }
  func.func @transform_1(%arg0: i32, %arg1: i32) -> (i32, i32) {
    %c0_i32 = arith.constant 0 : i32
    %c0_i32_0 = arith.constant 0 : i32
    %c0_i32_1 = arith.constant 0 : i32
    return %c0_i32, %c0_i32_0 : i32, i32
  }
  func.func @transform_2(%arg0: i32, %arg1: i32) -> (i32, i32) {
    %c0_i32 = arith.constant 0 : i32
    %c0_i32_0 = arith.constant 0 : i32
    %c0_i32_1 = arith.constant 0 : i32
    return %c0_i32, %c0_i32_0 : i32, i32
  }
  func.func @transform_3(%arg0: i32, %arg1: i32) -> (i32, i32) {
    %c0_i32 = arith.constant 0 : i32
    %c0_i32_0 = arith.constant 0 : i32
    %c0_i32_1 = arith.constant 0 : i32
    return %c0_i32, %c0_i32_0 : i32, i32
  }
  func.func @transform_4(%arg0: i32, %arg1: i32) -> (i32, i32) {
    %c0_i32 = arith.constant 0 : i32
    %c0_i32_0 = arith.constant 0 : i32
    %c0_i32_1 = arith.constant 0 : i32
    return %c0_i32, %c0_i32_0 : i32, i32
  }
  func.func @transform_5(%arg0: i32, %arg1: i32) -> (i32, i32) {
    %c0_i32 = arith.constant 0 : i32
    %c0_i32_0 = arith.constant 0 : i32
    return %arg0, %c0_i32 : i32, i32
  }
}

</mosaic_0001>

<llo_original>
// kernel: transformer_mlp.1
$region0: #{transformer_mlp.1}
  #allocation0 [shape = 'u32[]', space=smem, size = 0x4, offset = 0x4, fixed_abs, tag = 'smem constant byte address 0x4 - core index']
  #allocation1 [shape = 'u32[144,128]{1,0:T(1,128)}', space=vmem, size = 0x12000, scoped, tag = 'internal scratch']
  #allocation2 [shape = 'f32[16,256]{1,0:T(8,128)}', space=vmem, size = 0x4000, scoped, tag = 'scratch operand']
  %s0 = inlined_call_operand.vmem [shape: bf16[16,256], index: 0, kind: input, shape index: {}]
  %s1 = inlined_call_operand.vmem [shape: bf16[256,256], index: 1, kind: input, shape index: {}]
  %s2 = inlined_call_operand.vmem [shape: f32[1,256], index: 2, kind: input, shape index: {}]
  %s3 = inlined_call_operand.vmem [shape: bf16[256,256], index: 3, kind: input, shape index: {}]
  %s4 = inlined_call_operand.vmem [shape: f32[1,256], index: 4, kind: input, shape index: {}]
  %s5 = inlined_call_operand.vmem [shape: bf16[16,256], index: 5, kind: output, shape index: {}]
  %s6 = sld [smem:[#allocation0]]
  $region38: #{transformer_mlp.1} parent=0
    _
  %s8 = ssub.s32 1, %s6
  %s9 = scalar_select 0, %s8, %s6
  // Predicated region
  $region2: #{transformer_mlp.1} parent=0 // pred_check
    _
  $region3: #{transformer_mlp.1} parent=0 // pred_check_branch
    %11 = sbr.rel (0) target = $region5
  $region4: #{transformer_mlp.1} parent=0 // pred_region
    _
  $region5: #{transformer_mlp.1} parent=0 // pred_fallthru
    _
  // Predicated region
  $region6: #{transformer_mlp.1} parent=0 // pred_check
    _
  $region7: #{transformer_mlp.1} parent=0 // pred_check_branch
    %13 = sbr.rel (0) target = $region9
  $region8: #{transformer_mlp.1} parent=0 // pred_region
    _
  $region9: #{transformer_mlp.1} parent=0 // pred_fallthru
    _
  // Predicated region
  $region10: #{transformer_mlp.1} parent=0 // pred_check
    _
  $region11: #{transformer_mlp.1} parent=0 // pred_check_branch
    %15 = sbr.rel (0) target = $region13
  $region12: #{transformer_mlp.1} parent=0 // pred_region
    _
  $region13: #{transformer_mlp.1} parent=0 // pred_fallthru
    _
  // Predicated region
  $region14: #{transformer_mlp.1} parent=0 // pred_check
    _
  $region15: #{transformer_mlp.1} parent=0 // pred_check_branch
    %17 = sbr.rel (0) target = $region17
  $region16: #{transformer_mlp.1} parent=0 // pred_region
    _
  $region17: #{transformer_mlp.1} parent=0 // pred_fallthru
    _
  // Predicated region
  $region18: #{transformer_mlp.1} parent=0 // pred_check
    _
  $region19: #{transformer_mlp.1} parent=0 // pred_check_branch
    %19 = sbr.rel (0) target = $region21
  $region20: #{transformer_mlp.1} parent=0 // pred_region
    _
  $region21: #{transformer_mlp.1} parent=0 // pred_fallthru
    _
  %p20 = scmp.eq.s32.totalorder 0, 0
  // Predicated region
  $region22: #{transformer_mlp.1} parent=0 // pred_check
    %p21 = pneg %p20
  $region23: #{transformer_mlp.1} parent=0 // pred_check_branch
    %23 = sbr.rel (%p21) target = $region25
  $region24: #{transformer_mlp.1} parent=0 // pred_region
    %24 = vst [vmem:[#allocation2] sm:$0xff] 0.0
    %25 = vst [vmem:[#allocation2 + $0x8] sm:$0xff] 0.0
    %26 = vst [vmem:[#allocation2 + $0x10] sm:$0xff] 0.0
    %27 = vst [vmem:[#allocation2 + $0x18] sm:$0xff] 0.0
  $region25: #{transformer_mlp.1} parent=0 // pred_fallthru
    _
  %v28 = vld [vmem:[%s0] sm:$0xff]
  %v29 = vld [vmem:[%s0 + $0x8] sm:$0xff]
  %v30 = vld [vmem:[%s1] sm:$0xff]
  %v31 = vld [vmem:[%s1 + $0x8] sm:$0xff]
  %v32 = vld [vmem:[%s1 + $0x10] sm:$0xff]
  %v33 = vld [vmem:[%s1 + $0x18] sm:$0xff]
  %v34 = vld [vmem:[%s1 + $0x20] sm:$0xff]
  %v35 = vld [vmem:[%s1 + $0x28] sm:$0xff]
  %v36 = vld [vmem:[%s1 + $0x30] sm:$0xff]
  %v37 = vld [vmem:[%s1 + $0x38] sm:$0xff]
  %v38 = vld [vmem:[%s1 + $0x40] sm:$0xff]
  %v39 = vld [vmem:[%s1 + $0x48] sm:$0xff]
  %v40 = vld [vmem:[%s1 + $0x50] sm:$0xff]
  %v41 = vld [vmem:[%s1 + $0x58] sm:$0xff]
  %v42 = vld [vmem:[%s1 + $0x60] sm:$0xff]
  %v43 = vld [vmem:[%s1 + $0x68] sm:$0xff]
  %v44 = vld [vmem:[%s1 + $0x70] sm:$0xff]
  %v45 = vld [vmem:[%s1 + $0x78] sm:$0xff]
  %v46 = vld [vmem:[%s1 + $0x80] sm:$0xff]
  %v47 = vld [vmem:[%s1 + $0x88] sm:$0xff]
  %v48 = vld [vmem:[%s1 + $0x90] sm:$0xff]
  %v49 = vld [vmem:[%s1 + $0x98] sm:$0xff]
  %v50 = vld [vmem:[%s1 + $0xa0] sm:$0xff]
  %v51 = vld [vmem:[%s1 + $0xa8] sm:$0xff]
  %v52 = vld [vmem:[%s1 + $0xb0] sm:$0xff]
  %v53 = vld [vmem:[%s1 + $0xb8] sm:$0xff]
  %v54 = vld [vmem:[%s1 + $0xc0] sm:$0xff]
  %v55 = vld [vmem:[%s1 + $0xc8] sm:$0xff]
  %v56 = vld [vmem:[%s1 + $0xd0] sm:$0xff]
  %v57 = vld [vmem:[%s1 + $0xd8] sm:$0xff]
  %v58 = vld [vmem:[%s1 + $0xe0] sm:$0xff]
  %v59 = vld [vmem:[%s1 + $0xe8] sm:$0xff]
  %v60 = vld [vmem:[%s1 + $0xf0] sm:$0xff]
  %v61 = vld [vmem:[%s1 + $0xf8] sm:$0xff]
  %v62 = vld [vmem:[%s2] sm:$0x3]
  %v64 = vlaneseq
  %v65 = vshrl.u32 %v64, 7
  %v66 = vsub.s32 0, %v65
  %v67 = vrot.slane %v62, %v66
  %v68 = vlaneseq
  %v69 = vshrl.u32 %v68, 7
  %v70 = vsub.s32 1, %v69
  %v71 = vrot.slane %v62, %v70
  %v76 = vunpack.c.l.b16 %v28
  %v77 = vunpack.c.h.b16 %v28
  %v78 = vunpack.c.l.b16 %v29
  %v79 = vunpack.c.h.b16 %v29
  %v80 = vpack.c.b16 %v78, %v76
  %v81 = vpack.c.b16 %v79, %v77
  %v116 = vunpack.c.l.b16 %v30
  %v117 = vunpack.c.h.b16 %v30
  %v118 = vunpack.c.l.b16 %v31
  %v119 = vunpack.c.h.b16 %v31
  %v120 = vunpack.c.l.b16 %v32
  %v121 = vunpack.c.h.b16 %v32
  %v122 = vunpack.c.l.b16 %v33
  %v123 = vunpack.c.h.b16 %v33
  %v124 = vunpack.c.l.b16 %v34
  %v125 = vunpack.c.h.b16 %v34
  %v126 = vunpack.c.l.b16 %v35
  %v127 = vunpack.c.h.b16 %v35
  %v128 = vunpack.c.l.b16 %v36
  %v129 = vunpack.c.h.b16 %v36
  %v130 = vunpack.c.l.b16 %v37
  %v131 = vunpack.c.h.b16 %v37
  %v132 = vunpack.c.l.b16 %v38
  %v133 = vunpack.c.h.b16 %v38
  %v134 = vunpack.c.l.b16 %v39
  %v135 = vunpack.c.h.b16 %v39
  %v136 = vunpack.c.l.b16 %v40
  %v137 = vunpack.c.h.b16 %v40
  %v138 = vunpack.c.l.b16 %v41
  %v139 = vunpack.c.h.b16 %v41
  %v140 = vunpack.c.l.b16 %v42
  %v141 = vunpack.c.h.b16 %v42
  %v142 = vunpack.c.l.b16 %v43
  %v143 = vunpack.c.h.b16 %v43
  %v144 = vunpack.c.l.b16 %v44
  %v145 = vunpack.c.h.b16 %v44
  %v146 = vunpack.c.l.b16 %v45
  %v147 = vunpack.c.h.b16 %v45
  %v148 = vunpack.c.l.b16 %v46
  %v149 = vunpack.c.h.b16 %v46
  %v150 = vunpack.c.l.b16 %v47
  %v151 = vunpack.c.h.b16 %v47
  %v152 = vunpack.c.l.b16 %v48
  %v153 = vunpack.c.h.b16 %v48
  %v154 = vunpack.c.l.b16 %v49
  %v155 = vunpack.c.h.b16 %v49
  %v156 = vunpack.c.l.b16 %v50
  %v157 = vunpack.c.h.b16 %v50
  %v158 = vunpack.c.l.b16 %v51
  %v159 = vunpack.c.h.b16 %v51
  %v160 = vunpack.c.l.b16 %v52
  %v161 = vunpack.c.h.b16 %v52
  %v162 = vunpack.c.l.b16 %v53
  %v163 = vunpack.c.h.b16 %v53
  %v164 = vunpack.c.l.b16 %v54
  %v165 = vunpack.c.h.b16 %v54
  %v166 = vunpack.c.l.b16 %v55
  %v167 = vunpack.c.h.b16 %v55
  %v168 = vunpack.c.l.b16 %v56
  %v169 = vunpack.c.h.b16 %v56
  %v170 = vunpack.c.l.b16 %v57
  %v171 = vunpack.c.h.b16 %v57
  %v172 = vunpack.c.l.b16 %v58
  %v173 = vunpack.c.h.b16 %v58
  %v174 = vunpack.c.l.b16 %v59
  %v175 = vunpack.c.h.b16 %v59
  %v176 = vunpack.c.l.b16 %v60
  %v177 = vunpack.c.h.b16 %v60
  %v178 = vunpack.c.l.b16 %v61
  %v179 = vunpack.c.h.b16 %v61
  %v180 = vpack.c.b16 %v118, %v116
  %v181 = vpack.c.b16 %v119, %v117
  %v182 = vpack.c.b16 %v122, %v120
  %v183 = vpack.c.b16 %v123, %v121
  %v184 = vpack.c.b16 %v126, %v124
  %v185 = vpack.c.b16 %v127, %v125
  %v186 = vpack.c.b16 %v130, %v128
  %v187 = vpack.c.b16 %v131, %v129
  %v188 = vpack.c.b16 %v134, %v132
  %v189 = vpack.c.b16 %v135, %v133
  %v190 = vpack.c.b16 %v138, %v136
  %v191 = vpack.c.b16 %v139, %v137
  %v192 = vpack.c.b16 %v142, %v140
  %v193 = vpack.c.b16 %v143, %v141
  %v194 = vpack.c.b16 %v146, %v144
  %v195 = vpack.c.b16 %v147, %v145
  %v196 = vpack.c.b16 %v150, %v148
  %v197 = vpack.c.b16 %v151, %v149
  %v198 = vpack.c.b16 %v154, %v152
  %v199 = vpack.c.b16 %v155, %v153
  %v200 = vpack.c.b16 %v158, %v156
  %v201 = vpack.c.b16 %v159, %v157
  %v202 = vpack.c.b16 %v162, %v160
  %v203 = vpack.c.b16 %v163, %v161
  %v204 = vpack.c.b16 %v166, %v164
  %v205 = vpack.c.b16 %v167, %v165
  %v206 = vpack.c.b16 %v170, %v168
  %v207 = vpack.c.b16 %v171, %v169
  %v208 = vpack.c.b16 %v174, %v172
  %v209 = vpack.c.b16 %v175, %v173
  %v210 = vpack.c.b16 %v178, %v176
  %v211 = vpack.c.b16 %v179, %v177
  %244 = vmatprep.subr.bf16.mxu0 %v181
  %245 = vmatpush1.bf16.msra.mxu0 %v180
  %246 = vmatprep.subr.bf16.mxu0 %v183
  %247 = vmatpush1.bf16.msra.mxu0 %v182
  %248 = vmatprep.subr.bf16.mxu0 %v185
  %249 = vmatpush1.bf16.msra.mxu0 %v184
  %250 = vmatprep.subr.bf16.mxu0 %v187
  %251 = vmatpush1.bf16.msra.mxu0 %v186
  %252 = vmatprep.subr.bf16.mxu0 %v189
  %253 = vmatpush1.bf16.msra.mxu0 %v188
  %254 = vmatprep.subr.bf16.mxu0 %v191
  %255 = vmatpush1.bf16.msra.mxu0 %v190
  %256 = vmatprep.subr.bf16.mxu0 %v193
  %257 = vmatpush1.bf16.msra.mxu0 %v192
  %258 = vmatprep.subr.bf16.mxu0 %v195
  %259 = vmatpush1.bf16.msra.mxu0 %v194
  %260 = vmatprep.subr.bf16.mxu0 %v197
  %261 = vmatpush1.bf16.msra.mxu0 %v196
  %262 = vmatprep.subr.bf16.mxu0 %v199
  %263 = vmatpush1.bf16.msra.mxu0 %v198
  %264 = vmatprep.subr.bf16.mxu0 %v201
  %265 = vmatpush1.bf16.msra.mxu0 %v200
  %266 = vmatprep.subr.bf16.mxu0 %v203
  %267 = vmatpush1.bf16.msra.mxu0 %v202
  %268 = vmatprep.subr.bf16.mxu0 %v205
  %269 = vmatpush1.bf16.msra.mxu0 %v204
  %270 = vmatprep.subr.bf16.mxu0 %v207
  %271 = vmatpush1.bf16.msra.mxu0 %v206
  %272 = vmatprep.subr.bf16.mxu0 %v209
  %273 = vmatpush1.bf16.msra.mxu0 %v208
  %274 = vmatprep.subr.bf16.mxu0 %v211
  %275 = vmatpush1.bf16.msra.mxu0 %v210
  %276 = vmatprep.mubr.bf16.mxu0 %v81
  %277 = vmatmul.mubr.bf16.gmra.mrb[0].mxu0 %v80
  %v278 = vpop.f32.mrb[0].mxu0
  %v279 = vadd.f32 %v67, %v278
  %v280 = vpop.f32.mrb[0].mxu0
  %v281 = vadd.f32 %v71, %v280
  %v282 = vpop.f32.mrb[0].mxu0
  %v283 = vadd.f32 %v67, %v282
  %v284 = vpop.f32.mrb[0].mxu0
  %v285 = vadd.f32 %v71, %v284
  %286 = vdwg.mxu0
  %v287 = vmax.f32 %v279, 0.0
  %v288 = vmax.f32 %v281, 0.0
  %v289 = vmax.f32 %v283, 0.0
  %v290 = vmax.f32 %v285, 0.0
  %v291 = vld [vmem:[#allocation2] sm:$0xff]
  %v292 = vld [vmem:[#allocation2 + $0x8] sm:$0xff]
  %v293 = vld [vmem:[#allocation2 + $0x10] sm:$0xff]
  %v294 = vld [vmem:[#allocation2 + $0x18] sm:$0xff]
  %v295 = vpack.c.bf16 %v289, %v287
  %v296 = vpack.c.bf16 %v290, %v288
  %v297 = vld [vmem:[%s3] sm:$0xff]
  %v298 = vld [vmem:[%s3 + $0x8] sm:$0xff]
  %v299 = vld [vmem:[%s3 + $0x10] sm:$0xff]
  %v300 = vld [vmem:[%s3 + $0x18] sm:$0xff]
  %v301 = vld [vmem:[%s3 + $0x20] sm:$0xff]
  %v302 = vld [vmem:[%s3 + $0x28] sm:$0xff]
  %v303 = vld [vmem:[%s3 + $0x30] sm:$0xff]
  %v304 = vld [vmem:[%s3 + $0x38] sm:$0xff]
  %v305 = vld [vmem:[%s3 + $0x40] sm:$0xff]
  %v306 = vld [vmem:[%s3 + $0x48] sm:$0xff]
  %v307 = vld [vmem:[%s3 + $0x50] sm:$0xff]
  %v308 = vld [vmem:[%s3 + $0x58] sm:$0xff]
  %v309 = vld [vmem:[%s3 + $0x60] sm:$0xff]
  %v310 = vld [vmem:[%s3 + $0x68] sm:$0xff]
  %v311 = vld [vmem:[%s3 + $0x70] sm:$0xff]
  %v312 = vld [vmem:[%s3 + $0x78] sm:$0xff]
  %v313 = vld [vmem:[%s3 + $0x80] sm:$0xff]
  %v314 = vld [vmem:[%s3 + $0x88] sm:$0xff]
  %v315 = vld [vmem:[%s3 + $0x90] sm:$0xff]
  %v316 = vld [vmem:[%s3 + $0x98] sm:$0xff]
  %v317 = vld [vmem:[%s3 + $0xa0] sm:$0xff]
  %v318 = vld [vmem:[%s3 + $0xa8] sm:$0xff]
  %v319 = vld [vmem:[%s3 + $0xb0] sm:$0xff]
  %v320 = vld [vmem:[%s3 + $0xb8] sm:$0xff]
  %v321 = vld [vmem:[%s3 + $0xc0] sm:$0xff]
  %v322 = vld [vmem:[%s3 + $0xc8] sm:$0xff]
  %v323 = vld [vmem:[%s3 + $0xd0] sm:$0xff]
  %v324 = vld [vmem:[%s3 + $0xd8] sm:$0xff]
  %v325 = vld [vmem:[%s3 + $0xe0] sm:$0xff]
  %v326 = vld [vmem:[%s3 + $0xe8] sm:$0xff]
  %v327 = vld [vmem:[%s3 + $0xf0] sm:$0xff]
  %v328 = vld [vmem:[%s3 + $0xf8] sm:$0xff]
  %v361 = vunpack.c.l.b16 %v297
  %v362 = vunpack.c.h.b16 %v297
  %v363 = vunpack.c.l.b16 %v298
  %v364 = vunpack.c.h.b16 %v298
  %v365 = vunpack.c.l.b16 %v299
  %v366 = vunpack.c.h.b16 %v299
  %v367 = vunpack.c.l.b16 %v300
  %v368 = vunpack.c.h.b16 %v300
  %v369 = vunpack.c.l.b16 %v301
  %v370 = vunpack.c.h.b16 %v301
  %v371 = vunpack.c.l.b16 %v302
  %v372 = vunpack.c.h.b16 %v302
  %v373 = vunpack.c.l.b16 %v303
  %v374 = vunpack.c.h.b16 %v303
  %v375 = vunpack.c.l.b16 %v304
  %v376 = vunpack.c.h.b16 %v304
  %v377 = vunpack.c.l.b16 %v305
  %v378 = vunpack.c.h.b16 %v305
  %v379 = vunpack.c.l.b16 %v306
  %v380 = vunpack.c.h.b16 %v306
  %v381 = vunpack.c.l.b16 %v307
  %v382 = vunpack.c.h.b16 %v307
  %v383 = vunpack.c.l.b16 %v308
  %v384 = vunpack.c.h.b16 %v308
  %v385 = vunpack.c.l.b16 %v309
  %v386 = vunpack.c.h.b16 %v309
  %v387 = vunpack.c.l.b16 %v310
  %v388 = vunpack.c.h.b16 %v310
  %v389 = vunpack.c.l.b16 %v311
  %v390 = vunpack.c.h.b16 %v311
  %v391 = vunpack.c.l.b16 %v312
  %v392 = vunpack.c.h.b16 %v312
  %v393 = vunpack.c.l.b16 %v313
  %v394 = vunpack.c.h.b16 %v313
  %v395 = vunpack.c.l.b16 %v314
  %v396 = vunpack.c.h.b16 %v314
  %v397 = vunpack.c.l.b16 %v315
  %v398 = vunpack.c.h.b16 %v315
  %v399 = vunpack.c.l.b16 %v316
  %v400 = vunpack.c.h.b16 %v316
  %v401 = vunpack.c.l.b16 %v317
  %v402 = vunpack.c.h.b16 %v317
  %v403 = vunpack.c.l.b16 %v318
  %v404 = vunpack.c.h.b16 %v318
  %v405 = vunpack.c.l.b16 %v319
  %v406 = vunpack.c.h.b16 %v319
  %v407 = vunpack.c.l.b16 %v320
  %v408 = vunpack.c.h.b16 %v320
  %v409 = vunpack.c.l.b16 %v321
  %v410 = vunpack.c.h.b16 %v321
  %v411 = vunpack.c.l.b16 %v322
  %v412 = vunpack.c.h.b16 %v322
  %v413 = vunpack.c.l.b16 %v323
  %v414 = vunpack.c.h.b16 %v323
  %v415 = vunpack.c.l.b16 %v324
  %v416 = vunpack.c.h.b16 %v324
  %v417 = vunpack.c.l.b16 %v325
  %v418 = vunpack.c.h.b16 %v325
  %v419 = vunpack.c.l.b16 %v326
  %v420 = vunpack.c.h.b16 %v326
  %v421 = vunpack.c.l.b16 %v327
  %v422 = vunpack.c.h.b16 %v327
  %v423 = vunpack.c.l.b16 %v328
  %v424 = vunpack.c.h.b16 %v328
  %v425 = vpack.c.b16 %v363, %v361
  %v426 = vpack.c.b16 %v364, %v362
  %v427 = vpack.c.b16 %v367, %v365
  %v428 = vpack.c.b16 %v368, %v366
  %v429 = vpack.c.b16 %v371, %v369
  %v430 = vpack.c.b16 %v372, %v370
  %v431 = vpack.c.b16 %v375, %v373
  %v432 = vpack.c.b16 %v376, %v374
  %v433 = vpack.c.b16 %v379, %v377
  %v434 = vpack.c.b16 %v380, %v378
  %v435 = vpack.c.b16 %v383, %v381
  %v436 = vpack.c.b16 %v384, %v382
  %v437 = vpack.c.b16 %v387, %v385
  %v438 = vpack.c.b16 %v388, %v386
  %v439 = vpack.c.b16 %v391, %v389
  %v440 = vpack.c.b16 %v392, %v390
  %v441 = vpack.c.b16 %v395, %v393
  %v442 = vpack.c.b16 %v396, %v394
  %v443 = vpack.c.b16 %v399, %v397
  %v444 = vpack.c.b16 %v400, %v398
  %v445 = vpack.c.b16 %v403, %v401
  %v446 = vpack.c.b16 %v404, %v402
  %v447 = vpack.c.b16 %v407, %v405
  %v448 = vpack.c.b16 %v408, %v406
  %v449 = vpack.c.b16 %v411, %v409
  %v450 = vpack.c.b16 %v412, %v410
  %v451 = vpack.c.b16 %v415, %v413
  %v452 = vpack.c.b16 %v416, %v414
  %v453 = vpack.c.b16 %v419, %v417
  %v454 = vpack.c.b16 %v420, %v418
  %v455 = vpack.c.b16 %v423, %v421
  %v456 = vpack.c.b16 %v424, %v422
  %489 = vmatprep.subr.bf16.mxu0 %v426
  %490 = vmatpush1.bf16.msra.mxu0 %v425
  %491 = vmatprep.subr.bf16.mxu0 %v428
  %492 = vmatpush1.bf16.msra.mxu0 %v427
  %493 = vmatprep.subr.bf16.mxu0 %v430
  %494 = vmatpush1.bf16.msra.mxu0 %v429
  %495 = vmatprep.subr.bf16.mxu0 %v432
  %496 = vmatpush1.bf16.msra.mxu0 %v431
  %497 = vmatprep.subr.bf16.mxu0 %v434
  %498 = vmatpush1.bf16.msra.mxu0 %v433
  %499 = vmatprep.subr.bf16.mxu0 %v436
  %500 = vmatpush1.bf16.msra.mxu0 %v435
  %501 = vmatprep.subr.bf16.mxu0 %v438
  %502 = vmatpush1.bf16.msra.mxu0 %v437
  %503 = vmatprep.subr.bf16.mxu0 %v440
  %504 = vmatpush1.bf16.msra.mxu0 %v439
  %505 = vmatprep.subr.bf16.mxu0 %v442
  %506 = vmatpush1.bf16.msra.mxu0 %v441
  %507 = vmatprep.subr.bf16.mxu0 %v444
  %508 = vmatpush1.bf16.msra.mxu0 %v443
  %509 = vmatprep.subr.bf16.mxu0 %v446
  %510 = vmatpush1.bf16.msra.mxu0 %v445
  %511 = vmatprep.subr.bf16.mxu0 %v448
  %512 = vmatpush1.bf16.msra.mxu0 %v447
  %513 = vmatprep.subr.bf16.mxu0 %v450
  %514 = vmatpush1.bf16.msra.mxu0 %v449
  %515 = vmatprep.subr.bf16.mxu0 %v452
  %516 = vmatpush1.bf16.msra.mxu0 %v451
  %517 = vmatprep.subr.bf16.mxu0 %v454
  %518 = vmatpush1.bf16.msra.mxu0 %v453
  %519 = vmatprep.subr.bf16.mxu0 %v456
  %520 = vmatpush1.bf16.msra.mxu0 %v455
  %521 = vmatprep.mubr.bf16.mxu0 %v296
  %522 = vmatmul.mubr.bf16.gmra.mrb[0].mxu0 %v295
  %v523 = vpop.f32.mrb[0].mxu0
  %v524 = vadd.f32 0.0, %v523
  %v525 = vpop.f32.mrb[0].mxu0
  %v526 = vadd.f32 0.0, %v525
  %v527 = vpop.f32.mrb[0].mxu0
  %v528 = vadd.f32 0.0, %v527
  %v529 = vpop.f32.mrb[0].mxu0
  %v530 = vadd.f32 0.0, %v529
  %531 = vdwg.mxu0
  %v532 = vadd.f32 %v291, %v524
  %v533 = vadd.f32 %v292, %v526
  %v534 = vadd.f32 %v293, %v528
  %v535 = vadd.f32 %v294, %v530
  %536 = vst [vmem:[#allocation2] sm:$0xff] %v532
  %537 = vst [vmem:[#allocation2 + $0x8] sm:$0xff] %v533
  %538 = vst [vmem:[#allocation2 + $0x10] sm:$0xff] %v534
  %539 = vst [vmem:[#allocation2 + $0x18] sm:$0xff] %v535
  // Predicated region
  $region26: #{transformer_mlp.1} parent=0 // pred_check
    %p540 = pneg %p20
  $region27: #{transformer_mlp.1} parent=0 // pred_check_branch
    %542 = sbr.rel (%p540) target = $region29
  $region28: #{transformer_mlp.1} parent=0 // pred_region
    %v543 = vld [vmem:[#allocation2] sm:$0xff]
    %v544 = vld [vmem:[#allocation2 + $0x8] sm:$0xff]
    %v545 = vld [vmem:[#allocation2 + $0x10] sm:$0xff]
    %v546 = vld [vmem:[#allocation2 + $0x18] sm:$0xff]
    %v547 = vld [vmem:[%s4] sm:$0x3]
    %v549 = vlaneseq
    %v550 = vshrl.u32 %v549, 7
    %v551 = vsub.s32 0, %v550
    %v552 = vrot.slane %v547, %v551
    %v553 = vlaneseq
    %v554 = vshrl.u32 %v553, 7
    %v555 = vsub.s32 1, %v554
    %v556 = vrot.slane %v547, %v555
    %v559 = vadd.f32 %v543, %v552
    %v560 = vadd.f32 %v544, %v556
    %v561 = vadd.f32 %v545, %v552
    %v562 = vadd.f32 %v546, %v556
    %v563 = vpack.c.bf16 %v561, %v559
    %v564 = vpack.c.bf16 %v562, %v560
    %v567 = vunpack.c.l.b16 %v563
    %v568 = vunpack.c.l.b16 %v564
    %v569 = vunpack.c.h.b16 %v563
    %v570 = vunpack.c.h.b16 %v564
    %v571 = vpack.c.b16 %v568, %v567
    %v572 = vpack.c.b16 %v570, %v569
    %575 = vst [vmem:[%s5] sm:$0xff] %v571
    %576 = vst [vmem:[%s5 + $0x8] sm:$0xff] %v572
  $region29: #{transformer_mlp.1} parent=0 // pred_fallthru
    _
  // Predicated region
  $region30: #{transformer_mlp.1} parent=0 // pred_check
    _
  $region31: #{transformer_mlp.1} parent=0 // pred_check_branch
    %578 = sbr.rel (0) target = $region33
  $region32: #{transformer_mlp.1} parent=0 // pred_region
    _
  $region33: #{transformer_mlp.1} parent=0 // pred_fallthru
    _
  // Predicated region
  $region34: #{transformer_mlp.1} parent=0 // pred_check
    _
  $region35: #{transformer_mlp.1} parent=0 // pred_check_branch
    %580 = sbr.rel (0) target = $region37
  $region36: #{transformer_mlp.1} parent=0 // pred_region
    _
  $region37: #{transformer_mlp.1} parent=0 // pred_fallthru
    _

</llo_original>
